<compile_context>
chip_gen: v7x
topology: tpu7x:2x2x1
jax: 0.10.0
libtpu: 0.0.40
codegen_flags: <defaults>
</compile_context>

<pallas_src>
import math

import jax
import jax.numpy as jnp
from jax.experimental import pallas as pl
from jax.experimental.pallas import tpu as pltpu


def _round_up(n: int, m: int) -> int:
    return ((n + m - 1) // m) * m


def _vmem_budget_bytes() -> int:
    """~75% of physical VMEM; conservative 48 MiB fallback (safe on v7x)."""
    try:
        cap = pltpu.get_tpu_info().vmem_capacity_bytes
        return int(cap * 0.75)
    except Exception:
        return 48 * 1024 * 1024


def _wavelet_linear_kernel(x_ref, w_ref, b_ref, o_ref):
    # Cast x -> compute dtype *inside* the kernel; the VPU cast hides under the
    # MXU and the wrapper never materializes a cast copy of x in HBM.
    x = x_ref[...].astype(w_ref.dtype)
    y = jnp.dot(x, w_ref[...], preferred_element_type=jnp.float32)
    o_ref[...] = (y + b_ref[...]).astype(o_ref.dtype)


def fold_haar_into_linear(weight, bias, compute_dtype=jnp.bfloat16):
    """Fold the level-1 Haar analysis into the Linear weight (done once).

    weight: (out_dim, D//2), bias: (out_dim,)
    Returns W_eff (D, out_dim) in compute_dtype and bias (1, out_dim) in f32.
    """
    out_dim, dh = weight.shape
    inv_sqrt2 = jnp.float32(1.0 / math.sqrt(2.0))
    wt = weight.T.astype(jnp.float32) * inv_sqrt2             # (Dh, out_dim)
    w_eff = jnp.repeat(wt, 2, axis=0).astype(compute_dtype)   # (D,  out_dim)
    return w_eff, bias.astype(jnp.float32).reshape(1, out_dim)


def make_wavelet_conv1d(weight, bias, compute_dtype=jnp.bfloat16, tm=1024):
    """Returns forward(x) with folded parameters hoisted out of the call."""
    out_dim, dh = weight.shape
    d = 2 * dh
    n = out_dim
    tm = max(256, _round_up(tm, 256))     # 256-aligned row tile (MXU friendly)
    w_eff, b_row = fold_haar_into_linear(weight, bias, compute_dtype)
    w_itemsize = jnp.dtype(compute_dtype).itemsize

    def forward(x):
        bsz, d_in = x.shape
        assert d_in == d, f"expected input_dim={d}, got {d_in}"

        # --- row-tile selection -------------------------------------------
        if bsz >= 2 * tm:
            tm_eff = tm
        elif bsz >= 32:
            # Split into >= 2 programs so v7x's second TensorCore gets work;
            # keep 16-row (bf16-native) sublane alignment, 256 when large.
            half = pl.cdiv(bsz, 2)
            align = 256 if half >= 256 else 16
            tm_eff = _round_up(half, align)
        else:
            tm_eff = bsz              # single block == full (tiny) batch dim

        grid = (pl.cdiv(bsz, tm_eff),)

        out_dtype = compute_dtype
        out_itemsize = jnp.dtype(out_dtype).itemsize
        x_itemsize = jnp.dtype(x.dtype).itemsize

        # VMEM: double-buffered x/out tiles + resident weight/bias + headroom.
        vmem_needed = (2 * tm_eff * d * x_itemsize
                       + 2 * d * n * w_itemsize
                       + 2 * n * 4
                       + 2 * tm_eff * n * out_itemsize)
        vmem_limit = min(max(int(vmem_needed * 2), 4 * 1024 * 1024),
                         _vmem_budget_bytes())

        cost = pl.CostEstimate(
            flops=2 * bsz * d * n,
            transcendentals=0,
            bytes_accessed=(bsz * d * x_itemsize + d * n * w_itemsize
                            + n * 4 + bsz * n * out_itemsize),
        )

        return pl.pallas_call(
            _wavelet_linear_kernel,
            out_shape=jax.ShapeDtypeStruct((bsz, n), out_dtype),
            grid=grid,
            in_specs=[
                pl.BlockSpec((tm_eff, d), lambda i: (i, 0)),   # x: streamed by row tile
                pl.BlockSpec((d, n), lambda i: (0, 0)),        # W_eff: VMEM-resident
                pl.BlockSpec((1, n), lambda i: (0, 0)),        # bias: VMEM-resident
            ],
            out_specs=pl.BlockSpec((tm_eff, n), lambda i: (i, 0)),
            compiler_params=pltpu.CompilerParams(
                dimension_semantics=("parallel",),
                vmem_limit_bytes=vmem_limit,
            ),
            cost_estimate=cost,
        )(x, w_eff, b_row)

    return forward


def reference_forward(x, weight, bias):
    """Pure-JAX f32 reference mirroring pywt.wavedec(level=1,'haar') + Linear."""
    ca = (x[:, 0::2] + x[:, 1::2]) * jnp.float32(1.0 / math.sqrt(2.0))
    return ca @ weight.T + bias[None, :]


if __name__ == "__main__":
    # Small shapes consistent with the module: input_dim=16 -> 8 coeffs -> output_dim=8
    batch, input_dim, output_dim = 2, 16, 8

    key = jax.random.PRNGKey(0)
    kx, kw, kb, kx2 = jax.random.split(key, 4)

    x = jax.random.normal(kx, (batch, input_dim), dtype=jnp.float32)

    # Deterministic nn.Linear-style init: U(-1/sqrt(fan_in), 1/sqrt(fan_in))
    fan_in = input_dim // 2
    bound = 1.0 / math.sqrt(fan_in)
    weight = jax.random.uniform(kw, (output_dim, fan_in), jnp.float32, -bound, bound)
    bias = jax.random.uniform(kb, (output_dim,), jnp.float32, -bound, bound)

    y_ref = reference_forward(x, weight, bias)

    # bf16-operand / f32-accumulate path (recommended on v6e/v7x); bf16 output.
    fwd_bf16 = jax.jit(make_wavelet_conv1d(weight, bias, compute_dtype=jnp.bfloat16))
    y_bf16 = jax.block_until_ready(fwd_bf16(x))
    assert y_bf16.shape == (batch, output_dim)
    assert y_bf16.dtype == jnp.bfloat16
    assert jnp.allclose(y_bf16.astype(jnp.float32), y_ref, atol=3e-2, rtol=3e-2), \
        "bf16 kernel mismatch"

    # f32 path for a tight numerical check against the pywt-style reference.
    fwd_f32 = jax.jit(make_wavelet_conv1d(weight, bias, compute_dtype=jnp.float32))
    y_f32 = jax.block_until_ready(fwd_f32(x))
    assert y_f32.shape == (batch, output_dim)
    assert jnp.allclose(y_f32, y_ref, atol=1e-5, rtol=1e-5), "f32 kernel mismatch"

    # Larger batch exercises the multi-program grid + ragged last block path
    # (no batch padding, masked writeback of the partial tile).
    x2 = jax.random.normal(kx2, (100, input_dim), dtype=jnp.float32)
    y2 = jax.block_until_ready(fwd_f32(x2))
    assert y2.shape == (100, output_dim)
    assert jnp.allclose(y2, reference_forward(x2, weight, bias),
                        atol=1e-5, rtol=1e-5), "ragged-grid kernel mismatch"

    print("KERNEL_OK")
</pallas_src>

<mosaic_0001>
module attributes {stable_mosaic.version = 11 : i64} {
  func.func @_wavelet_linear_kernel(%arg0: i32, %arg1: memref<2x16xf32, #tpu.memory_space<vmem>>, %arg2: memref<16x8xbf16, #tpu.memory_space<vmem>>, %arg3: memref<1x8xf32, #tpu.memory_space<vmem>>, %arg4: memref<2x8xbf16, #tpu.memory_space<vmem>>) attributes {dimension_semantics = [#tpu.dimension_semantics<parallel>], iteration_bounds = array<i64: 1>, scalar_prefetch = 0 : i64, scratch_operands = 0 : i64, tpu.core_type = #tpu.core_type<tc>, window_params = [{transform_indices = @transform_0, window_bounds = array<i64: 2, 16>}, {pipeline_mode = #tpu.pipeline_mode<synchronous>, transform_indices = @transform_1, window_bounds = array<i64: 16, 8>}, {pipeline_mode = #tpu.pipeline_mode<synchronous>, transform_indices = @transform_2, window_bounds = array<i64: 1, 8>}, {transform_indices = @transform_3, window_bounds = array<i64: 2, 8>}]} {
    %c0 = arith.constant 0 : index
    %c0_0 = arith.constant 0 : index
    %0 = vector.load %arg1[%c0, %c0_0] : memref<2x16xf32, #tpu.memory_space<vmem>>, vector<2x16xf32>
    %1 = arith.truncf %0 : vector<2x16xf32> to vector<2x16xbf16>
    %c0_1 = arith.constant 0 : index
    %c0_2 = arith.constant 0 : index
    %2 = vector.load %arg2[%c0_1, %c0_2] : memref<16x8xbf16, #tpu.memory_space<vmem>>, vector<16x8xbf16>
    %cst = arith.constant dense<0.000000e+00> : vector<2x8xf32>
    %3 = tpu.matmul %1, %2, %cst {dimension_numbers = #tpu.dot_dimension_numbers<[1], [0], [0], [1], [0, 0, 1, 1], [], []>} : vector<2x16xbf16>, vector<16x8xbf16>, vector<2x8xf32> -> vector<2x8xf32>
    %c0_3 = arith.constant 0 : index
    %c0_4 = arith.constant 0 : index
    %4 = vector.load %arg3[%c0_3, %c0_4] : memref<1x8xf32, #tpu.memory_space<vmem>>, vector<1x8xf32>
    %5 = vector.broadcast %4 : vector<1x8xf32> to vector<2x8xf32>
    %6 = arith.addf %3, %5 : vector<2x8xf32>
    %7 = arith.truncf %6 : vector<2x8xf32> to vector<2x8xbf16>
    %c0_5 = arith.constant 0 : index
    %c0_6 = arith.constant 0 : index
    %8 = vector.load %arg4[%c0_5, %c0_6] : memref<2x8xbf16, #tpu.memory_space<vmem>>, vector<2x8xbf16>
    tpu.vector_store %arg4[%c0_5, %c0_6], %7 {strides = array<i32>} : memref<2x8xbf16, #tpu.memory_space<vmem>>, vector<2x8xbf16>,
    return
  }
  func.func @transform_0(%arg0: i32) -> (i32, i32) {
    %c0_i32 = arith.constant 0 : i32
    %c0_i32_0 = arith.constant 0 : i32
    return %arg0, %c0_i32 : i32, i32
  }
  func.func @transform_1(%arg0: i32) -> (i32, i32) {
    %c0_i32 = arith.constant 0 : i32
    %c0_i32_0 = arith.constant 0 : i32
    %c0_i32_1 = arith.constant 0 : i32
    return %c0_i32, %c0_i32_0 : i32, i32
  }
  func.func @transform_2(%arg0: i32) -> (i32, i32) {
    %c0_i32 = arith.constant 0 : i32
    %c0_i32_0 = arith.constant 0 : i32
    %c0_i32_1 = arith.constant 0 : i32
    return %c0_i32, %c0_i32_0 : i32, i32
  }
  func.func @transform_3(%arg0: i32) -> (i32, i32) {
    %c0_i32 = arith.constant 0 : i32
    %c0_i32_0 = arith.constant 0 : i32
    return %arg0, %c0_i32 : i32, i32
  }
}

</mosaic_0001>

<llo_original>
// kernel: forward.1
$region0: #{forward.1}
  #allocation0 [shape = 'u32[]', space=smem, size = 0x4, offset = 0x4, fixed_abs, tag = 'smem constant byte address 0x4 - core index']
  #allocation1 [shape = 'u32[144,128]{1,0:T(1,128)}', space=vmem, size = 0x12000, scoped, tag = 'internal scratch']
  %s0 = inlined_call_operand.vmem [shape: f32[2,16], index: 0, kind: input, shape index: {}]
  %s1 = inlined_call_operand.vmem [shape: bf16[16,8], index: 1, kind: input, shape index: {}]
  %s2 = inlined_call_operand.vmem [shape: f32[1,8], index: 2, kind: input, shape index: {}]
  %s3 = inlined_call_operand.hbm [shape: bf16[2,8], index: 3, kind: output, shape index: {}]
  %s4 = sld [smem:[#allocation0]]
  $region22: #{forward.1} parent=0
    _
  %s6 = ssub.s32 1, %s4
  %s7 = scalar_select 0, %s6, %s4
  $region1: #{forward.1} parent=0
    #allocation2 [shape = 'u8[512]{0}', space=vmem, size = 0x400, scoped, tag = 'output window, operand 0, single buffered']
    #allocation3 [shape = 's32[1]{0}', space=sflag, size = 0x4, scoped, tag = 'scoped memory for forward.1']
    %8 = vsyncpa [#allocation3], 0
    // Predicated region
    $region2: #{forward.1} parent=1 // pred_check
      _
    $region3: #{forward.1} parent=1 // pred_check_branch
      %10 = sbr.rel (0) target = $region5
    $region4: #{forward.1} parent=1 // pred_region
      _
    $region5: #{forward.1} parent=1 // pred_fallthru
      _
    // Predicated region
    $region6: #{forward.1} parent=1 // pred_check
      _
    $region7: #{forward.1} parent=1 // pred_check_branch
      %12 = sbr.rel (0) target = $region9
    $region8: #{forward.1} parent=1 // pred_region
      _
    $region9: #{forward.1} parent=1 // pred_fallthru
      _
    // Predicated region
    $region10: #{forward.1} parent=1 // pred_check
      _
    $region11: #{forward.1} parent=1 // pred_check_branch
      %14 = sbr.rel (0) target = $region13
    $region12: #{forward.1} parent=1 // pred_region
      _
    $region13: #{forward.1} parent=1 // pred_fallthru
      _
    %v16 = vld [vmem:[%s0] sm:$0x3]
    %v17 = vpack.c.bf16 %v16, %v16
    %v18 = vld [vmem:[%s1] sm:$0xf]
    %v19 = vld [vmem:[%s1 + $0x4] sm:$0xf]
    %v20 = vld [vmem:[%s2] sm:$0x1]
    %v22 = vlaneseq
    %v23 = vshrl.u32 %v22, 7
    %v24 = vsub.s32 0, %v23
    %v25 = vrot.slane %v20, %v24
    %v29 = vunpack.c.l.b16 %v18
    %v30 = vunpack.c.l.b16 %v19
    %v31 = vpack.c.b16 %v30, %v29
    %vm33 = vcmask 130048
    %v35 = vsel %vm33, %v17, 0
    %37 = vmatprep.subr.bf16.mxu0 0
    %38 = vmatpush1.bf16.msra.mxu0 %v31
    %39 = vmatprep.subr.bf16.mxu0 0
    %40 = vmatpush1.bf16.msra.mxu0 0
    %41 = vmatprep.subr.bf16.mxu0 0
    %42 = vmatpush1.bf16.msra.mxu0 0
    %43 = vmatprep.subr.bf16.mxu0 0
    %44 = vmatpush1.bf16.msra.mxu0 0
    %45 = vmatprep.subr.bf16.mxu0 0
    %46 = vmatpush1.bf16.msra.mxu0 0
    %47 = vmatprep.subr.bf16.mxu0 0
    %48 = vmatpush1.bf16.msra.mxu0 0
    %49 = vmatprep.subr.bf16.mxu0 0
    %50 = vmatpush1.bf16.msra.mxu0 0
    %51 = vmatprep.subr.bf16.mxu0 0
    %52 = vmatpush1.bf16.msra.mxu0 0
    %53 = vmatprep.subr.bf16.mxu0 0
    %54 = vmatpush1.bf16.msra.mxu0 0
    %55 = vmatprep.subr.bf16.mxu0 0
    %56 = vmatpush1.bf16.msra.mxu0 0
    %57 = vmatprep.subr.bf16.mxu0 0
    %58 = vmatpush1.bf16.msra.mxu0 0
    %59 = vmatprep.subr.bf16.mxu0 0
    %60 = vmatpush1.bf16.msra.mxu0 0
    %61 = vmatprep.subr.bf16.mxu0 0
    %62 = vmatpush1.bf16.msra.mxu0 0
    %63 = vmatprep.subr.bf16.mxu0 0
    %64 = vmatpush1.bf16.msra.mxu0 0
    %65 = vmatprep.subr.bf16.mxu0 0
    %66 = vmatpush1.bf16.msra.mxu0 0
    %67 = vmatprep.subr.bf16.mxu0 0
    %68 = vmatpush1.bf16.msra.mxu0 0
    %69 = vmatprep.mubr.bf16.mxu0 0
    %70 = vmatmul.mubr.bf16.gmra.mrb[0].mxu0 %v35
    %v71 = vpop.f32.mrb[0].mxu0
    %v72 = vadd.f32 %v25, %v71
    %v73 = vpop.f32.mrb[0].mxu0
    %v74 = vpop.f32.mrb[0].mxu0
    %v75 = vpop.f32.mrb[0].mxu0
    %76 = vdwg.mxu0
    %v77 = vpack.c.bf16 %v72, %v72
    %vm78 = vcmask 57344
    %79 = vst.msk [vmem:[#allocation2] sm:$0x1] %vm78, %v77
    // Predicated region
    $region14: #{forward.1} parent=1 // pred_check
      _
    $region15: #{forward.1} parent=1 // pred_check_branch
      %81 = sbr.rel (0) target = $region17
    $region16: #{forward.1} parent=1 // pred_region
      %s83 = ssub.s32 16, 16
      %84 = vsyncadd [#allocation3], %s83
      %s86 = sshll.u32 [#allocation2], 4
      %s87 = int_to_ptr.vmem [resolvable:$true] %s86
      %89 = dma.vmem_to_hbm [thread:$0]  %s87, 16, %s3, [#allocation3]
    $region17: #{forward.1} parent=1 // pred_fallthru
      _
    // Predicated region
    $region18: #{forward.1} parent=1 // pred_check
      _
    $region19: #{forward.1} parent=1 // pred_check_branch
      %91 = sbr.rel (0) target = $region21
    $region20: #{forward.1} parent=1 // pred_region
      %92 = dma.done [#allocation3], 16
    $region21: #{forward.1} parent=1 // pred_fallthru
      _
    %93 = vsyncpa [#allocation3], 1

</llo_original>
